<compile_context>
chip_gen: v7x
topology: tpu7x:2x2x1
jax: 0.10.0
libtpu: 0.0.40
codegen_flags: <defaults>
</compile_context>

<pallas_src>
import jax
import jax.numpy as jnp
from jax.experimental import pallas as pl
from jax.experimental.pallas import tpu as pltpu


def _round_up(x, m):
    return ((x + m - 1) // m) * m


def _vmem_limit_bytes():
    """Generation-aware scoped-VMEM budget (~3/4 of per-core capacity)."""
    try:
        cap = int(pltpu.get_tpu_info().vmem_capacity_bytes)
    except Exception:
        cap = 128 * 1024 * 1024            # v5e/v6e physical VMEM fallback
    # v5e/v6e: 128 MiB -> 96 MiB; v7x: 64 MiB -> 48 MiB.
    return int(min((cap * 3) // 4, 100 * 1024 * 1024))


def _choose_tile_n(n_tokens, num_items, d, t, itemsize, vmem_limit, tile_n_max):
    """Pick the token-tile width (multiple of 128) from the VMEM budget."""
    n128 = _round_up(max(n_tokens, 1), 128)
    # Resident, single-buffered bytes: fused table + W2^T + lane-padded b2.
    resident = (d * num_items + t * d) * itemsize + t * 128 * 4
    # Bytes that scale with tile_n: ids (2 bufs, 8 sublanes, int32), output
    # (2 bufs, f32), one-hot + iota (num_items rows), gathered rows (D, f32).
    per_col = 2 * 8 * 4 + 2 * t * 4 + num_items * (4 + itemsize) + d * 4
    budget = max(vmem_limit - resident, per_col * 128)
    tile = budget // per_col
    # Keep the one-hot + iota intermediate around <= 2 MiB per tile.
    tile = min(tile, max((2 * 1024 * 1024) // (num_items * (4 + itemsize)), 128))
    tile = min(tile, tile_n_max, n128)
    # Give the megacore / dual-TC grid at least 2 steps when there is work.
    if n128 >= 2 * 128:
        tile = min(tile, n128 // 2)
    return max((tile // 128) * 128, 128)


def _fused_encoder_kernel(ids_ref, tbl_t_ref, w2_t_ref, b2_ref, o_ref):
    # ids_ref:   (1, TILE_N) int32   lane-dense token ids for this tile
    # tbl_t_ref: (D, V)              fused item table (transposed), resident
    # w2_t_ref:  (T, D)              tower weight (transposed), resident
    # b2_ref:    (T, 1) f32          tower bias column, resident
    # o_ref:     (T, TILE_N)         transposed output tile (lane-dense store)
    ids = ids_ref[...]
    num_items = tbl_t_ref.shape[1]
    tile_n = ids.shape[1]

    # One-hot gather built transposed so the token axis stays on the lanes:
    # onehot_t[v, n] = (ids[n] == v).  Exact row selection fed to the MXU.
    item_iota = jax.lax.broadcasted_iota(jnp.int32, (num_items, tile_n), 0)
    onehot_t = (item_iota == ids).astype(tbl_t_ref.dtype)        # (V, TILE_N)

    # gathered_t[:, n] = fused_tbl[ids[n], :]   -> (D, TILE_N), f32 accumulation.
    gathered_t = jnp.dot(tbl_t_ref[...], onehot_t,
                         preferred_element_type=jnp.float32)

    # Tower MLP, still transposed: ReLU(W2^T @ gathered + b2)  -> (T, TILE_N).
    out_t = jnp.dot(w2_t_ref[...], gathered_t.astype(w2_t_ref.dtype),
                    preferred_element_type=jnp.float32) + b2_ref[...]
    o_ref[...] = jnp.maximum(out_t, 0.0).astype(o_ref.dtype)


def te_item_encoder_with_id(batch_ids, id_table, text_table, w1, b1, w2, b2,
                            *, compute_dtype=jnp.float32, tile_n_max=1024):
    """batch_ids: int32 (B, L). Returns float32 (B, L, T)."""
    B, L = batch_ids.shape
    N = B * L
    num_items, D = id_table.shape
    T = w2.shape[1]
    itemsize = jnp.dtype(compute_dtype).itemsize

    # ---- Fold lm_projection + id fusion into the item table (exact fold). ----
    hi = jax.lax.Precision.HIGHEST
    proj = jnp.maximum(
        jnp.dot(text_table.astype(jnp.float32), w1.astype(jnp.float32),
                precision=hi) + b1.astype(jnp.float32), 0.0)
    fused_tbl = proj + id_table.astype(jnp.float32)              # (V, D)
    # NOTE: for num_items <~ batch size one could fold W2/b2/ReLU in as well
    # (pure-gather kernel); we keep the tower MLP on the MXU for generality.

    # Transposed operands: the token axis will live on the 128-wide lane dim.
    fused_tbl_t = fused_tbl.T.astype(compute_dtype)              # (D, V)
    w2_t = w2.T.astype(compute_dtype)                            # (T, D)
    b2_col = b2.reshape(T, 1).astype(jnp.float32)                # (T, 1)

    vmem_limit = _vmem_limit_bytes()
    tile_n = _choose_tile_n(N, num_items, D, T, itemsize, vmem_limit, tile_n_max)
    n_pad = _round_up(N, tile_n)

    # ids: clamp (jnp.take-style) so out-of-range ids never yield an all-zero
    # one-hot row; pad with id 0; lane-dense (1, n_pad) layout.
    flat_ids = jnp.clip(batch_ids.reshape(N).astype(jnp.int32), 0, num_items - 1)
    if n_pad != N:
        flat_ids = jnp.pad(flat_ids, (0, n_pad - N))
    ids_row = flat_ids.reshape(1, n_pad)

    grid = (n_pad // tile_n,)

    flops = 2 * n_pad * (num_items * D + D * T)
    bytes_accessed = (n_pad * 4
                      + (fused_tbl_t.size + w2_t.size) * itemsize
                      + b2_col.size * 4
                      + n_pad * T * 4)

    out_t = pl.pallas_call(
        _fused_encoder_kernel,
        out_shape=jax.ShapeDtypeStruct((T, n_pad), jnp.float32),
        grid=grid,
        in_specs=[
            pl.BlockSpec((1, tile_n), lambda i: (0, i)),            # ids: streamed
            pl.BlockSpec((D, num_items), lambda i: (0, 0),
                         pipeline_mode=pl.Buffered(1)),             # fused table
            pl.BlockSpec((T, D), lambda i: (0, 0),
                         pipeline_mode=pl.Buffered(1)),             # W2^T
            pl.BlockSpec((T, 1), lambda i: (0, 0),
                         pipeline_mode=pl.Buffered(1)),             # b2
        ],
        out_specs=pl.BlockSpec((T, tile_n), lambda i: (0, i)),
        compiler_params=pltpu.CompilerParams(
            dimension_semantics=("parallel",),
            vmem_limit_bytes=vmem_limit),
        cost_estimate=pl.CostEstimate(
            flops=int(flops), transcendentals=0,
            bytes_accessed=int(bytes_accessed)),
    )(ids_row, fused_tbl_t, w2_t, b2_col)

    # Un-transpose, drop padding, restore (B, L, T).
    return out_t[:, :N].T.reshape(B, L, T)


if __name__ == "__main__":
    # Small, module-consistent shapes.
    num_items = 64      # train_data.num_items
    H = 32              # text_encoder_config.hidden_size
    D = 32              # embed_dim
    T = 32              # tower_mlp_layer = [32]
    B, L = 2, 8         # batch of item-id sequences

    key = jax.random.PRNGKey(0)
    k_id, k_txt, k_w1, k_b1, k_w2, k_b2, k_batch = jax.random.split(key, 7)

    # Deterministic synthetic parameters (no checkpoint loading).
    id_table = jax.random.normal(k_id, (num_items, D), jnp.float32) * 0.02
    id_table = id_table.at[0].set(0.0)                   # padding_idx=0
    text_table = jax.random.normal(k_txt, (num_items, H), jnp.float32)
    # mimic normalize_embeddings=True on the (synthetic) text embeddings
    text_table = text_table / jnp.linalg.norm(text_table, axis=-1, keepdims=True)

    w1 = jax.random.normal(k_w1, (H, D), jnp.float32) * (1.0 / jnp.sqrt(H))
    b1 = jax.random.normal(k_b1, (D,), jnp.float32) * 0.01
    w2 = jax.random.normal(k_w2, (D, T), jnp.float32) * (1.0 / jnp.sqrt(D))
    b2 = jax.random.normal(k_b2, (T,), jnp.float32) * 0.01

    batch_ids = jax.random.randint(k_batch, (B, L), 0, num_items, jnp.int32)

    # Pure-JAX f32 reference (module math, full precision).
    hi = jax.lax.Precision.HIGHEST
    ids = batch_ids.reshape(-1)
    ref = jnp.maximum(
        jnp.dot(jnp.take(text_table, ids, 0), w1, precision=hi) + b1, 0.0)
    ref = ref + jnp.take(id_table, ids, 0)
    ref = jnp.maximum(jnp.dot(ref, w2, precision=hi) + b2, 0.0)

    # 1) f32 streams. Tolerance allows for default-precision MXU passes on the
    #    in-kernel dots (XLA/Mosaic may use bf16 passes for f32 operands).
    out_f32 = jax.block_until_ready(
        te_item_encoder_with_id(batch_ids, id_table, text_table,
                                w1, b1, w2, b2, compute_dtype=jnp.float32))
    assert out_f32.shape == (B, L, T)
    assert jnp.allclose(out_f32.reshape(-1, T), ref, atol=1e-2, rtol=1e-2)

    # 2) bf16 table/weight streams (perf config): loose check vs f32 reference.
    out_bf16 = jax.block_until_ready(
        te_item_encoder_with_id(batch_ids, id_table, text_table,
                                w1, b1, w2, b2, compute_dtype=jnp.bfloat16))
    assert out_bf16.shape == (B, L, T)
    assert jnp.allclose(out_bf16.reshape(-1, T), ref, atol=5e-2, rtol=5e-2)

    print("KERNEL_OK")
</pallas_src>

<mosaic_0001>
module attributes {stable_mosaic.version = 11 : i64} {
  func.func @_fused_encoder_kernel(%arg0: i32, %arg1: memref<1x128xi32, #tpu.memory_space<vmem>>, %arg2: memref<32x64xf32, #tpu.memory_space<vmem>>, %arg3: memref<32x32xf32, #tpu.memory_space<vmem>>, %arg4: memref<32x1xf32, #tpu.memory_space<vmem>>, %arg5: memref<32x128xf32, #tpu.memory_space<vmem>>) attributes {dimension_semantics = [#tpu.dimension_semantics<parallel>], iteration_bounds = array<i64: 1>, scalar_prefetch = 0 : i64, scratch_operands = 0 : i64, tpu.core_type = #tpu.core_type<tc>, window_params = [{transform_indices = @transform_0, window_bounds = array<i64: 1, 128>}, {pipeline_mode = #tpu.pipeline_mode<synchronous>, transform_indices = @transform_1, window_bounds = array<i64: 32, 64>}, {pipeline_mode = #tpu.pipeline_mode<synchronous>, transform_indices = @transform_2, window_bounds = array<i64: 32, 32>}, {pipeline_mode = #tpu.pipeline_mode<synchronous>, transform_indices = @transform_3, window_bounds = array<i64: 32, 1>}, {transform_indices = @transform_4, window_bounds = array<i64: 32, 128>}]} {
    %c0 = arith.constant 0 : index
    %c0_0 = arith.constant 0 : index
    %0 = vector.load %arg1[%c0, %c0_0] : memref<1x128xi32, #tpu.memory_space<vmem>>, vector<1x128xi32>
    %1 = tpu.iota {dimensions = array<i32: 0>} : vector<64x128xi32>
    %2 = vector.broadcast %0 : vector<1x128xi32> to vector<64x128xi32>
    %3 = arith.cmpi eq, %1, %2 : vector<64x128xi32>
    %4 = arith.extui %3 : vector<64x128xi1> to vector<64x128xi32>
    %5 = arith.sitofp %4 : vector<64x128xi32> to vector<64x128xf32>
    %c0_1 = arith.constant 0 : index
    %c0_2 = arith.constant 0 : index
    %6 = vector.load %arg2[%c0_1, %c0_2] : memref<32x64xf32, #tpu.memory_space<vmem>>, vector<32x64xf32>
    %cst = arith.constant dense<0.000000e+00> : vector<32x128xf32>
    %7 = tpu.matmul %6, %5, %cst {dimension_numbers = #tpu.dot_dimension_numbers<[1], [0], [0], [1], [0, 0, 1, 1], [], []>} : vector<32x64xf32>, vector<64x128xf32>, vector<32x128xf32> -> vector<32x128xf32>
    %c0_3 = arith.constant 0 : index
    %c0_4 = arith.constant 0 : index
    %8 = vector.load %arg3[%c0_3, %c0_4] : memref<32x32xf32, #tpu.memory_space<vmem>>, vector<32x32xf32>
    %cst_5 = arith.constant dense<0.000000e+00> : vector<32x128xf32>
    %9 = tpu.matmul %8, %7, %cst_5 {dimension_numbers = #tpu.dot_dimension_numbers<[1], [0], [0], [1], [0, 0, 1, 1], [], []>} : vector<32x32xf32>, vector<32x128xf32>, vector<32x128xf32> -> vector<32x128xf32>
    %c0_6 = arith.constant 0 : index
    %c0_7 = arith.constant 0 : index
    %10 = vector.load %arg4[%c0_6, %c0_7] : memref<32x1xf32, #tpu.memory_space<vmem>>, vector<32x1xf32>
    %11 = vector.broadcast %10 : vector<32x1xf32> to vector<32x128xf32>
    %12 = arith.addf %9, %11 : vector<32x128xf32>
    %cst_8 = arith.constant 0.000000e+00 : f32
    %13 = vector.broadcast %cst_8 : f32 to vector<32x128xf32>
    %14 = arith.maximumf %12, %13 : vector<32x128xf32>
    %c0_9 = arith.constant 0 : index
    %c0_10 = arith.constant 0 : index
    %15 = vector.load %arg5[%c0_9, %c0_10] : memref<32x128xf32, #tpu.memory_space<vmem>>, vector<32x128xf32>
    tpu.vector_store %arg5[%c0_9, %c0_10], %14 {strides = array<i32>} : memref<32x128xf32, #tpu.memory_space<vmem>>, vector<32x128xf32>,
    return
  }
  func.func @transform_0(%arg0: i32) -> (i32, i32) {
    %c0_i32 = arith.constant 0 : i32
    %c0_i32_0 = arith.constant 0 : i32
    return %c0_i32, %arg0 : i32, i32
  }
  func.func @transform_1(%arg0: i32) -> (i32, i32) {
    %c0_i32 = arith.constant 0 : i32
    %c0_i32_0 = arith.constant 0 : i32
    %c0_i32_1 = arith.constant 0 : i32
    return %c0_i32, %c0_i32_0 : i32, i32
  }
  func.func @transform_2(%arg0: i32) -> (i32, i32) {
    %c0_i32 = arith.constant 0 : i32
    %c0_i32_0 = arith.constant 0 : i32
    %c0_i32_1 = arith.constant 0 : i32
    return %c0_i32, %c0_i32_0 : i32, i32
  }
  func.func @transform_3(%arg0: i32) -> (i32, i32) {
    %c0_i32 = arith.constant 0 : i32
    %c0_i32_0 = arith.constant 0 : i32
    %c0_i32_1 = arith.constant 0 : i32
    return %c0_i32, %c0_i32_0 : i32, i32
  }
  func.func @transform_4(%arg0: i32) -> (i32, i32) {
    %c0_i32 = arith.constant 0 : i32
    %c0_i32_0 = arith.constant 0 : i32
    return %c0_i32, %arg0 : i32, i32
  }
}

</mosaic_0001>

<llo_original>
// kernel: tpu_custom_call.1
$region0: #{tpu_custom_call.1}
  #allocation0 [shape = 'u32[]', space=smem, size = 0x4, offset = 0x4, fixed_abs, tag = 'smem constant byte address 0x4 - core index']
  #allocation1 [shape = 'u32[144,128]{1,0:T(1,128)}', space=vmem, size = 0x12000, scoped, tag = 'internal scratch']
  %s0 = inlined_call_operand.hbm [shape: s32[1,128], index: 0, kind: input, shape index: {}]
  %s1 = inlined_call_operand.hbm [shape: f32[32,64], index: 1, kind: input, shape index: {}]
  %s2 = inlined_call_operand.hbm [shape: f32[32,32], index: 2, kind: input, shape index: {}]
  %s3 = inlined_call_operand.hbm [shape: f32[32,1], index: 3, kind: input, shape index: {}]
  %s4 = inlined_call_operand.hbm [shape: f32[32,128], index: 4, kind: output, shape index: {}]
  %s5 = sld [smem:[#allocation0]]
  $region42: #{tpu_custom_call.1} parent=0
    _
  %s7 = ssub.s32 1, %s5
  %s8 = scalar_select 0, %s7, %s5
  $region1: #{tpu_custom_call.1} parent=0
    #allocation2 [shape = 'u8[512]{0}', space=vmem, size = 0x400, scoped, tag = 'input window, operand 0, single buffered']
    #allocation3 [shape = 's32[1]{0}', space=sflag, size = 0x4, scoped, tag = 'scoped memory for tpu_custom_call.1']
    #allocation4 [shape = 's32[1]{0}', space=sflag, size = 0x4, scoped, tag = 'scoped memory for tpu_custom_call.1']
    #allocation5 [shape = 'u8[16384]{0}', space=vmem, size = 0x4000, scoped, tag = 'input window, operand 1, single buffered']
    #allocation6 [shape = 's32[1]{0}', space=sflag, size = 0x4, scoped, tag = 'scoped memory for tpu_custom_call.1']
    #allocation7 [shape = 'u8[16384]{0}', space=vmem, size = 0x4000, scoped, tag = 'input window, operand 2, single buffered']
    #allocation8 [shape = 'u8[16384]{0}', space=vmem, size = 0x4000, scoped, tag = 'input window, operand 3, single buffered']
    #allocation9 [shape = 's32[1]{0}', space=sflag, size = 0x4, scoped, tag = 'scoped memory for tpu_custom_call.1']
    #allocation10 [shape = 'u8[16384]{0}', space=vmem, size = 0x4000, scoped, tag = 'output window, operand 0, single buffered']
    %9 = vsyncpa [#allocation3], 0
    %10 = vsyncpa [#allocation6], 0
    %11 = vsyncpa [#allocation9], 0
    %12 = vsyncpa [#allocation4], 0
    // Predicated region
    $region2: #{tpu_custom_call.1} parent=1 // pred_check
      _
    $region3: #{tpu_custom_call.1} parent=1 // pred_check_branch
      %14 = sbr.rel (0) target = $region5
    $region4: #{tpu_custom_call.1} parent=1 // pred_region
      %s16 = ssub.s32 16, 16
      %17 = vsyncadd [#allocation3], %s16
      %s19 = sshll.u32 [#allocation2], 4
      %s20 = int_to_ptr.vmem [resolvable:$true] %s19
      %22 = dma.hbm_to_vmem [thread:$0]  %s0, 16, %s20, [#allocation3]
    $region5: #{tpu_custom_call.1} parent=1 // pred_fallthru
      _
    // Predicated region
    $region6: #{tpu_custom_call.1} parent=1 // pred_check
      _
    $region7: #{tpu_custom_call.1} parent=1 // pred_check_branch
      %24 = sbr.rel (0) target = $region9
    $region8: #{tpu_custom_call.1} parent=1 // pred_region
      %s26 = ssub.s32 512, 512
      %27 = vsyncadd [#allocation6], %s26
      %s28 = sshll.u32 [#allocation5], 4
      %s29 = int_to_ptr.vmem [resolvable:$true] %s28
      %34 = dma.hbm_to_vmem [thread:$0]  %s1, 512, %s29, [#allocation6], 128, 128, 8
    $region9: #{tpu_custom_call.1} parent=1 // pred_fallthru
      _
    // Predicated region
    $region10: #{tpu_custom_call.1} parent=1 // pred_check
      _
    $region11: #{tpu_custom_call.1} parent=1 // pred_check_branch
      %36 = sbr.rel (0) target = $region13
    $region12: #{tpu_custom_call.1} parent=1 // pred_region
      %s38 = ssub.s32 512, 512
      %39 = vsyncadd [#allocation6], %s38
      %s40 = sshll.u32 [#allocation7], 4
      %s41 = int_to_ptr.vmem [resolvable:$true] %s40
      %46 = dma.hbm_to_vmem [thread:$0]  %s2, 512, %s41, [#allocation6], 128, 128, 8
    $region13: #{tpu_custom_call.1} parent=1 // pred_fallthru
      _
    // Predicated region
    $region14: #{tpu_custom_call.1} parent=1 // pred_check
      _
    $region15: #{tpu_custom_call.1} parent=1 // pred_check_branch
      %48 = sbr.rel (0) target = $region17
    $region16: #{tpu_custom_call.1} parent=1 // pred_region
      %s50 = ssub.s32 512, 512
      %51 = vsyncadd [#allocation9], %s50
      %s52 = sshll.u32 [#allocation8], 4
      %s53 = int_to_ptr.vmem [resolvable:$true] %s52
      %58 = dma.hbm_to_vmem [thread:$0]  %s3, 512, %s53, [#allocation9], 128, 128, 8
    $region17: #{tpu_custom_call.1} parent=1 // pred_fallthru
      _
    // Predicated region
    $region18: #{tpu_custom_call.1} parent=1 // pred_check
      _
    $region19: #{tpu_custom_call.1} parent=1 // pred_check_branch
      %60 = sbr.rel (0) target = $region21
    $region20: #{tpu_custom_call.1} parent=1 // pred_region
      %61 = dma.done [#allocation3], 16
    $region21: #{tpu_custom_call.1} parent=1 // pred_fallthru
      _
    // Predicated region
    $region22: #{tpu_custom_call.1} parent=1 // pred_check
      _
    $region23: #{tpu_custom_call.1} parent=1 // pred_check_branch
      %63 = sbr.rel (0) target = $region25
    $region24: #{tpu_custom_call.1} parent=1 // pred_region
      %64 = dma.done [#allocation6], 512
    $region25: #{tpu_custom_call.1} parent=1 // pred_fallthru
      _
    // Predicated region
    $region26: #{tpu_custom_call.1} parent=1 // pred_check
      _
    $region27: #{tpu_custom_call.1} parent=1 // pred_check_branch
      %66 = sbr.rel (0) target = $region29
    $region28: #{tpu_custom_call.1} parent=1 // pred_region
      %67 = dma.done [#allocation6], 512
    $region29: #{tpu_custom_call.1} parent=1 // pred_fallthru
      _
    // Predicated region
    $region30: #{tpu_custom_call.1} parent=1 // pred_check
      _
    $region31: #{tpu_custom_call.1} parent=1 // pred_check_branch
      %69 = sbr.rel (0) target = $region33
    $region32: #{tpu_custom_call.1} parent=1 // pred_region
      %70 = dma.done [#allocation9], 512
    $region33: #{tpu_custom_call.1} parent=1 // pred_fallthru
      _
    %v71 = vld [vmem:[#allocation2] sm:$0x1]
    %v72 = vlaneseq
    %v73 = vshrl.u32 %v72, 7
    %v74 = vadd.s32 %v73, 8
    %v75 = vadd.s32 %v73, 16
    %v76 = vadd.s32 %v73, 24
    %v77 = vadd.s32 %v73, 32
    %v78 = vadd.s32 %v73, 40
    %v79 = vadd.s32 %v73, 48
    %v80 = vadd.s32 %v73, 56
    %v81 = vlaneseq
    %v82 = vshrl.u32 %v81, 7
    %v83 = vsub.s32 0, %v82
    %v84 = vrot.slane %v71, %v83
    %vm85 = vcmp.eq.s32.totalorder %v73, %v84
    %vm86 = vcmp.eq.s32.totalorder %v74, %v84
    %vm87 = vcmp.eq.s32.totalorder %v75, %v84
    %vm88 = vcmp.eq.s32.totalorder %v76, %v84
    %vm89 = vcmp.eq.s32.totalorder %v77, %v84
    %vm90 = vcmp.eq.s32.totalorder %v78, %v84
    %vm91 = vcmp.eq.s32.totalorder %v79, %v84
    %vm92 = vcmp.eq.s32.totalorder %v80, %v84
    %v93 = vsel %vm85, 1, 0
    %v94 = vsel %vm86, 1, 0
    %v95 = vsel %vm87, 1, 0
    %v96 = vsel %vm88, 1, 0
    %v97 = vsel %vm89, 1, 0
    %v98 = vsel %vm90, 1, 0
    %v99 = vsel %vm91, 1, 0
    %v100 = vsel %vm92, 1, 0
    %v101 = vcvt.s32.f32 %v93
    %v102 = vcvt.s32.f32 %v94
    %v103 = vcvt.s32.f32 %v95
    %v104 = vcvt.s32.f32 %v96
    %v105 = vcvt.s32.f32 %v97
    %v106 = vcvt.s32.f32 %v98
    %v107 = vcvt.s32.f32 %v99
    %v108 = vcvt.s32.f32 %v100
    %v109 = vld [vmem:[#allocation5] sm:$0xff]
    %v110 = vld [vmem:[#allocation5 + $0x8] sm:$0xff]
    %v111 = vld [vmem:[#allocation5 + $0x10] sm:$0xff]
    %v112 = vld [vmem:[#allocation5 + $0x18] sm:$0xff]
    %vm113 = vcmask 523264
    %v115 = vsel %vm113, %v109, 0
    %v118 = vsel %vm113, %v110, 0
    %v121 = vsel %vm113, %v111, 0
    %v124 = vsel %vm113, %v112, 0
    %126 = vmatprep.subr.mxu0 0.0
    %127 = vmatpush1.msra.mxu0 %v101
    %128 = vmatprep.subr.mxu0 0.0
    %129 = vmatpush1.msra.mxu0 %v102
    %130 = vmatprep.subr.mxu0 0.0
    %131 = vmatpush1.msra.mxu0 %v103
    %132 = vmatprep.subr.mxu0 0.0
    %133 = vmatpush1.msra.mxu0 %v104
    %134 = vmatprep.subr.mxu0 0.0
    %135 = vmatpush1.msra.mxu0 %v105
    %136 = vmatprep.subr.mxu0 0.0
    %137 = vmatpush1.msra.mxu0 %v106
    %138 = vmatprep.subr.mxu0 0.0
    %139 = vmatpush1.msra.mxu0 %v107
    %140 = vmatprep.subr.mxu0 0.0
    %141 = vmatpush1.msra.mxu0 %v108
    %142 = vmatprep.subr.mxu0 0.0
    %143 = vmatpush1.msra.mxu0 0.0
    %144 = vmatprep.subr.mxu0 0.0
    %145 = vmatpush1.msra.mxu0 0.0
    %146 = vmatprep.subr.mxu0 0.0
    %147 = vmatpush1.msra.mxu0 0.0
    %148 = vmatprep.subr.mxu0 0.0
    %149 = vmatpush1.msra.mxu0 0.0
    %150 = vmatprep.subr.mxu0 0.0
    %151 = vmatpush1.msra.mxu0 0.0
    %152 = vmatprep.subr.mxu0 0.0
    %153 = vmatpush1.msra.mxu0 0.0
    %154 = vmatprep.subr.mxu0 0.0
    %155 = vmatpush1.msra.mxu0 0.0
    %156 = vmatprep.subr.mxu0 0.0
    %157 = vmatpush1.msra.mxu0 0.0
    %158 = vmatprep.subr.mxu0 0.0
    %159 = vmatpush1.msra.mxu0 0.0
    %160 = vmatprep.subr.mxu0 0.0
    %161 = vmatpush1.msra.mxu0 0.0
    %162 = vmatprep.subr.mxu0 0.0
    %163 = vmatpush1.msra.mxu0 0.0
    %164 = vmatprep.subr.mxu0 0.0
    %165 = vmatpush1.msra.mxu0 0.0
    %166 = vmatprep.subr.mxu0 0.0
    %167 = vmatpush1.msra.mxu0 0.0
    %168 = vmatprep.subr.mxu0 0.0
    %169 = vmatpush1.msra.mxu0 0.0
    %170 = vmatprep.subr.mxu0 0.0
    %171 = vmatpush1.msra.mxu0 0.0
    %172 = vmatprep.subr.mxu0 0.0
    %173 = vmatpush1.msra.mxu0 0.0
    %174 = vmatprep.subr.mxu0 0.0
    %175 = vmatpush1.msra.mxu0 0.0
    %176 = vmatprep.subr.mxu0 0.0
    %177 = vmatpush1.msra.mxu0 0.0
    %178 = vmatprep.subr.mxu0 0.0
    %179 = vmatpush1.msra.mxu0 0.0
    %180 = vmatprep.subr.mxu0 0.0
    %181 = vmatpush1.msra.mxu0 0.0
    %182 = vmatprep.subr.mxu0 0.0
    %183 = vmatpush1.msra.mxu0 0.0
    %184 = vmatprep.subr.mxu0 0.0
    %185 = vmatpush1.msra.mxu0 0.0
    %186 = vmatprep.subr.mxu0 0.0
    %187 = vmatpush1.msra.mxu0 0.0
    %188 = vmatprep.subr.mxu0 0.0
    %189 = vmatpush1.msra.mxu0 0.0
    %190 = vmatprep.mubr.f32.mxu0 0.0
    %191 = vmatmul.mubr.f32.gmra.mrb[0].mxu0 %v115
    %v192 = vpop.f32.mrb[0].mxu0
    %v193 = vadd.f32 0.0, %v192
    %v194 = vpop.f32.mrb[0].mxu0
    %195 = vmatprep.mubr.f32.mxu0 0.0
    %196 = vmatmul.mubr.f32.gmra.mrb[0].mxu0 %v118
    %v197 = vpop.f32.mrb[0].mxu0
    %v198 = vadd.f32 0.0, %v197
    %v199 = vpop.f32.mrb[0].mxu0
    %200 = vmatprep.mubr.f32.mxu0 0.0
    %201 = vmatmul.mubr.f32.gmra.mrb[0].mxu0 %v121
    %v202 = vpop.f32.mrb[0].mxu0
    %v203 = vadd.f32 0.0, %v202
    %v204 = vpop.f32.mrb[0].mxu0
    %205 = vmatprep.mubr.f32.mxu0 0.0
    %206 = vmatmul.mubr.f32.gmra.mrb[0].mxu0 %v124
    %v207 = vpop.f32.mrb[0].mxu0
    %v208 = vadd.f32 0.0, %v207
    %v209 = vpop.f32.mrb[0].mxu0
    %210 = vdwg.mxu0
    %v211 = vld [vmem:[#allocation7] sm:$0xff]
    %v212 = vld [vmem:[#allocation7 + $0x8] sm:$0xff]
    %v213 = vld [vmem:[#allocation7 + $0x10] sm:$0xff]
    %v214 = vld [vmem:[#allocation7 + $0x18] sm:$0xff]
    %v215 = vld [vmem:[#allocation8] sm:$0xff]
    %v216 = vld [vmem:[#allocation8 + $0x8] sm:$0xff]
    %v217 = vld [vmem:[#allocation8 + $0x10] sm:$0xff]
    %v218 = vld [vmem:[#allocation8 + $0x18] sm:$0xff]
    %220 = vset.pattern.permute.xlu0 0
    %221 = vperm.xlu0 %220, %v215
    %v222 = vpop.permute.xlu0 %221
    %225 = vset.pattern.permute.xlu0 0
    %226 = vperm.xlu0 %225, %v216
    %v227 = vpop.permute.xlu0 %226
    %230 = vset.pattern.permute.xlu0 0
    %231 = vperm.xlu0 %230, %v217
    %v232 = vpop.permute.xlu0 %231
    %235 = vset.pattern.permute.xlu0 0
    %236 = vperm.xlu0 %235, %v218
    %v237 = vpop.permute.xlu0 %236
    %vm239 = vcmask 261120
    %v241 = vsel %vm239, %v211, 0
    %v244 = vsel %vm239, %v212, 0
    %v247 = vsel %vm239, %v213, 0
    %v250 = vsel %vm239, %v214, 0
    %252 = vmatprep.subr.mxu0 0.0
    %253 = vmatpush1.msra.mxu0 %v193
    %254 = vmatprep.subr.mxu0 0.0
    %255 = vmatpush1.msra.mxu0 %v198
    %256 = vmatprep.subr.mxu0 0.0
    %257 = vmatpush1.msra.mxu0 %v203
    %258 = vmatprep.subr.mxu0 0.0
    %259 = vmatpush1.msra.mxu0 %v208
    %260 = vmatprep.subr.mxu0 0.0
    %261 = vmatpush1.msra.mxu0 0.0
    %262 = vmatprep.subr.mxu0 0.0
    %263 = vmatpush1.msra.mxu0 0.0
    %264 = vmatprep.subr.mxu0 0.0
    %265 = vmatpush1.msra.mxu0 0.0
    %266 = vmatprep.subr.mxu0 0.0
    %267 = vmatpush1.msra.mxu0 0.0
    %268 = vmatprep.subr.mxu0 0.0
    %269 = vmatpush1.msra.mxu0 0.0
    %270 = vmatprep.subr.mxu0 0.0
    %271 = vmatpush1.msra.mxu0 0.0
    %272 = vmatprep.subr.mxu0 0.0
    %273 = vmatpush1.msra.mxu0 0.0
    %274 = vmatprep.subr.mxu0 0.0
    %275 = vmatpush1.msra.mxu0 0.0
    %276 = vmatprep.subr.mxu0 0.0
    %277 = vmatpush1.msra.mxu0 0.0
    %278 = vmatprep.subr.mxu0 0.0
    %279 = vmatpush1.msra.mxu0 0.0
    %280 = vmatprep.subr.mxu0 0.0
    %281 = vmatpush1.msra.mxu0 0.0
    %282 = vmatprep.subr.mxu0 0.0
    %283 = vmatpush1.msra.mxu0 0.0
    %284 = vmatprep.subr.mxu0 0.0
    %285 = vmatpush1.msra.mxu0 0.0
    %286 = vmatprep.subr.mxu0 0.0
    %287 = vmatpush1.msra.mxu0 0.0
    %288 = vmatprep.subr.mxu0 0.0
    %289 = vmatpush1.msra.mxu0 0.0
    %290 = vmatprep.subr.mxu0 0.0
    %291 = vmatpush1.msra.mxu0 0.0
    %292 = vmatprep.subr.mxu0 0.0
    %293 = vmatpush1.msra.mxu0 0.0
    %294 = vmatprep.subr.mxu0 0.0
    %295 = vmatpush1.msra.mxu0 0.0
    %296 = vmatprep.subr.mxu0 0.0
    %297 = vmatpush1.msra.mxu0 0.0
    %298 = vmatprep.subr.mxu0 0.0
    %299 = vmatpush1.msra.mxu0 0.0
    %300 = vmatprep.subr.mxu0 0.0
    %301 = vmatpush1.msra.mxu0 0.0
    %302 = vmatprep.subr.mxu0 0.0
    %303 = vmatpush1.msra.mxu0 0.0
    %304 = vmatprep.subr.mxu0 0.0
    %305 = vmatpush1.msra.mxu0 0.0
    %306 = vmatprep.subr.mxu0 0.0
    %307 = vmatpush1.msra.mxu0 0.0
    %308 = vmatprep.subr.mxu0 0.0
    %309 = vmatpush1.msra.mxu0 0.0
    %310 = vmatprep.subr.mxu0 0.0
    %311 = vmatpush1.msra.mxu0 0.0
    %312 = vmatprep.subr.mxu0 0.0
    %313 = vmatpush1.msra.mxu0 0.0
    %314 = vmatprep.subr.mxu0 0.0
    %315 = vmatpush1.msra.mxu0 0.0
    %316 = vmatprep.mubr.f32.mxu0 0.0
    %317 = vmatmul.mubr.f32.gmra.mrb[0].mxu0 %v241
    %v318 = vpop.f32.mrb[0].mxu0
    %v319 = vadd.f32 %v222, %v318
    %v320 = vpop.f32.mrb[0].mxu0
    %321 = vmatprep.mubr.f32.mxu0 0.0
    %322 = vmatmul.mubr.f32.gmra.mrb[0].mxu0 %v244
    %v323 = vpop.f32.mrb[0].mxu0
    %v324 = vadd.f32 %v227, %v323
    %v325 = vpop.f32.mrb[0].mxu0
    %326 = vmatprep.mubr.f32.mxu0 0.0
    %327 = vmatmul.mubr.f32.gmra.mrb[0].mxu0 %v247
    %v328 = vpop.f32.mrb[0].mxu0
    %v329 = vadd.f32 %v232, %v328
    %v330 = vpop.f32.mrb[0].mxu0
    %331 = vmatprep.mubr.f32.mxu0 0.0
    %332 = vmatmul.mubr.f32.gmra.mrb[0].mxu0 %v250
    %v333 = vpop.f32.mrb[0].mxu0
    %v334 = vadd.f32 %v237, %v333
    %v335 = vpop.f32.mrb[0].mxu0
    %336 = vdwg.mxu0
    %v337 = vmax.f32 %v319, 0.0
    %v338 = vmax.f32 %v324, 0.0
    %v339 = vmax.f32 %v329, 0.0
    %v340 = vmax.f32 %v334, 0.0
    %341 = vst [vmem:[#allocation10] sm:$0xff] %v337
    %342 = vst [vmem:[#allocation10 + $0x8] sm:$0xff] %v338
    %343 = vst [vmem:[#allocation10 + $0x10] sm:$0xff] %v339
    %344 = vst [vmem:[#allocation10 + $0x18] sm:$0xff] %v340
    // Predicated region
    $region34: #{tpu_custom_call.1} parent=1 // pred_check
      _
    $region35: #{tpu_custom_call.1} parent=1 // pred_check_branch
      %346 = sbr.rel (0) target = $region37
    $region36: #{tpu_custom_call.1} parent=1 // pred_region
      %s348 = ssub.s32 512, 512
      %349 = vsyncadd [#allocation4], %s348
      %s350 = sshll.u32 [#allocation10], 4
      %s351 = int_to_ptr.vmem [resolvable:$true] %s350
      %356 = dma.vmem_to_hbm [thread:$0]  %s351, 512, %s4, [#allocation4], 128, 128, 8
    $region37: #{tpu_custom_call.1} parent=1 // pred_fallthru
      _
    // Predicated region
    $region38: #{tpu_custom_call.1} parent=1 // pred_check
      _
    $region39: #{tpu_custom_call.1} parent=1 // pred_check_branch
      %358 = sbr.rel (0) target = $region41
    $region40: #{tpu_custom_call.1} parent=1 // pred_region
      %359 = dma.done [#allocation4], 512
    $region41: #{tpu_custom_call.1} parent=1 // pred_fallthru
      _
    %360 = vsyncpa [#allocation3], 1
    %361 = vsyncpa [#allocation6], 1
    %362 = vsyncpa [#allocation9], 1
    %363 = vsyncpa [#allocation4], 1

</llo_original>
